<compile_context>
chip_gen: v7x
topology: tpu7x:2x2x1
jax: 0.10.0
libtpu: 0.0.40
codegen_flags: <defaults>
</compile_context>

<pallas_src>
import functools

import jax
import jax.numpy as jnp
from jax import lax
from jax.experimental import pallas as pl
from jax.experimental.pallas import tpu as pltpu

# hyper-parameters from the PyTorch module
EMBEDDING_DIM = 300            # GloVe / fastText / Levy-dep raw width
EMBEDDING_PROJECTION = 256
LSTM_DIM = 512
MLP_HIDDEN_LAYER = 1024
TAGSET_SIZE = 3
CLS_PAD = 128                  # lane-dense classifier output width (>= TAGSET_SIZE)
DME_K_PAD = 1024               # 3*300 = 900 zero-padded to a multiple of 128


def _vmem_limit_bytes():
    """Per-generation VMEM ceiling: ~75% of physical, capped at 100 MiB.

    v5e/v6e (128 MiB physical) -> 96 MiB; v7x (64 MiB physical) -> 48 MiB.
    """
    cap = 64 * 1024 * 1024
    try:
        info = pltpu.get_tpu_info()
        cap = int(getattr(info, "vmem_capacity_bytes", cap)) or cap
    except Exception:
        pass
    return min(cap * 3 // 4, 100 * 1024 * 1024)


VMEM_LIMIT = _vmem_limit_bytes()


def _round_up(n, m):
    return ((n + m - 1) // m) * m


def _pick_tile(n, cap=512):
    """Largest tile <= cap in {1024,...,8} dividing n (keeps (8,128) tiling happy)."""
    for t in (1024, 512, 256, 128, 64, 32, 16, 8):
        if t <= cap and n % t == 0:
            return t
    return n


# ----------------------------------------------------------------------------
# Kernel 1: fused UnweightedDME projection (K padded to 1024), bf16 output.
#           Output is time-major so no XLA transpose round-trip is needed.
# ----------------------------------------------------------------------------
def _embed_proj_kernel(e_ref, wdme_ref, bdme_ref, proj_ref):
    # DME: mean of three projections == one (rows, 1024) @ (1024, 256) matmul
    proj = (jnp.dot(e_ref[...], wdme_ref[...], preferred_element_type=jnp.float32)
            + bdme_ref[...])
    proj_ref[...] = proj.astype(jnp.bfloat16)


def embed_project(params, tokens):
    """tokens: (B2, T) int32 -> DME projection (T, B2, 256) bf16."""
    B2, T = tokens.shape
    # gather in time-major order so the kernel output is already (T, B2, ...)
    flat_tb = jnp.transpose(tokens, (1, 0)).reshape(-1)                 # (T*B2,)
    e = jnp.take(params["emb_cat"], flat_tb, axis=0)                    # (T*B2, 1024) bf16

    rows = T * B2
    row_tile = _pick_tile(rows, cap=1024)
    K = params["emb_cat"].shape[1]
    P = EMBEDDING_PROJECTION

    proj = pl.pallas_call(
        _embed_proj_kernel,
        out_shape=jax.ShapeDtypeStruct((rows, P), jnp.bfloat16),
        grid_spec=pltpu.PrefetchScalarGridSpec(
            num_scalar_prefetch=0,
            grid=(rows // row_tile,),
            in_specs=[
                pl.BlockSpec((row_tile, K), lambda i: (i, 0)),
                pl.BlockSpec((K, P), lambda i: (0, 0)),
                pl.BlockSpec((1, P), lambda i: (0, 0)),
            ],
            out_specs=pl.BlockSpec((row_tile, P), lambda i: (i, 0)),
        ),
        compiler_params=pltpu.CompilerParams(
            dimension_semantics=("parallel",),
            vmem_limit_bytes=VMEM_LIMIT),
    )(e, params["w_dme"], params["b_dme"])

    return proj.reshape(T, B2, P)


# ----------------------------------------------------------------------------
# Kernel 2: bidirectional LSTM recurrence (x@Wih and h@Whh both in-kernel) with
#           length-masked max pooling over time.  Forward & backward chains are
#           interleaved per step (2x ILP on single-TC chips).  grid = (batch,)
# ----------------------------------------------------------------------------
def _bilstm_maxpool_kernel(xp_ref, len_ref, wih_ref, bih_ref, whh_ref, out_ref,
                           h_scr, c_scr, pool_scr, *, seq_len, hidden):
    h_scr[...] = jnp.zeros_like(h_scr)
    c_scr[...] = jnp.zeros_like(c_scr)
    pool_scr[...] = jnp.full_like(pool_scr, -1e30)
    lens = len_ref[...]                                  # (btile, 1) int32

    def step(s, carry):
        def one_dir(d, t):
            x_t = xp_ref[t]                              # (btile, P) bf16
            h_prev = h_scr[d]
            c_prev = c_scr[d]
            gates = (jnp.dot(x_t, wih_ref[d], preferred_element_type=jnp.float32)
                     + bih_ref[d]
                     + jnp.dot(h_prev.astype(jnp.bfloat16), whh_ref[d],
                               preferred_element_type=jnp.float32))
            i_g = jax.nn.sigmoid(gates[:, 0:hidden])
            f_g = jax.nn.sigmoid(gates[:, hidden:2 * hidden])
            g_g = jnp.tanh(gates[:, 2 * hidden:3 * hidden])
            o_g = jax.nn.sigmoid(gates[:, 3 * hidden:4 * hidden])
            c_new = f_g * c_prev + i_g * g_g
            h_new = o_g * jnp.tanh(c_new)
            # padded steps do not update state (packed-sequence semantics;
            # assumes trailing padding, as produced by standard SNLI batching)
            valid = t < lens                             # (btile, 1) bool
            c_scr[d] = jnp.where(valid, c_new, c_prev)
            h_scr[d] = jnp.where(valid, h_new, h_prev)
            pool_scr[d] = jnp.where(valid, jnp.maximum(pool_scr[d], h_new),
                                    pool_scr[d])

        one_dir(0, s)                   # forward chain
        one_dir(1, seq_len - 1 - s)     # backward chain (independent -> ILP)
        return carry

    lax.fori_loop(0, seq_len, step, 0, unroll=2)
    out_ref[:, 0:hidden] = pool_scr[0]
    out_ref[:, hidden:2 * hidden] = pool_scr[1]


def bilstm_maxpool(params, xproj, lengths):
    """xproj: (T, B2, 256) bf16, lengths: (B2,) int32 -> pooled (B2, 2H) f32."""
    T, B2, P = xproj.shape
    H = LSTM_DIM
    G = 4 * H
    btile = _pick_tile(B2, cap=256)          # 256 fills the 2x256 MXU on v6e/v7x
    lens2d = lengths.reshape(B2, 1).astype(jnp.int32)

    kern = functools.partial(_bilstm_maxpool_kernel, seq_len=T, hidden=H)

    return pl.pallas_call(
        kern,
        out_shape=jax.ShapeDtypeStruct((B2, 2 * H), jnp.float32),
        grid_spec=pltpu.PrefetchScalarGridSpec(
            num_scalar_prefetch=0,
            grid=(B2 // btile,),
            in_specs=[
                pl.BlockSpec((T, btile, P), lambda b: (0, b, 0)),     # bf16 stream
                pl.BlockSpec((btile, 1), lambda b: (b, 0)),           # lengths
                pl.BlockSpec((2, P, G), lambda b: (0, 0, 0)),         # Wih (resident)
                pl.BlockSpec((2, 1, G), lambda b: (0, 0, 0)),         # b_ih + b_hh
                pl.BlockSpec((2, H, G), lambda b: (0, 0, 0)),         # Whh (resident)
            ],
            out_specs=pl.BlockSpec((btile, 2 * H), lambda b: (b, 0)),
            scratch_shapes=[pltpu.VMEM((2, btile, H), jnp.float32),   # h  (fwd, bwd)
                            pltpu.VMEM((2, btile, H), jnp.float32),   # c
                            pltpu.VMEM((2, btile, H), jnp.float32)],  # max-pool acc
        ),
        compiler_params=pltpu.CompilerParams(
            dimension_semantics=("parallel",),
            vmem_limit_bytes=VMEM_LIMIT),
    )(xproj, lens2d, params["w_ih"], params["b_ih"], params["w_hh"])


# ----------------------------------------------------------------------------
# Kernel 3: feature combination m = [u, v, |u-v|, u*v] + 2-layer MLP classifier
#           (lane-dense padded output), tiled over batch.
# ----------------------------------------------------------------------------
def _classifier_kernel(u_ref, v_ref, w1_ref, b1_ref, w2_ref, b2_ref, out_ref, *, feat):
    u = u_ref[...]
    v = v_ref[...]
    d = jnp.abs(u - v)
    p = u * v
    ub = u.astype(jnp.bfloat16)
    vb = v.astype(jnp.bfloat16)
    db = d.astype(jnp.bfloat16)
    pb = p.astype(jnp.bfloat16)
    # m @ W1 computed block-wise (avoids materializing the 4*feat concat)
    h = (jnp.dot(ub, w1_ref[0:feat, :], preferred_element_type=jnp.float32)
         + jnp.dot(vb, w1_ref[feat:2 * feat, :], preferred_element_type=jnp.float32)
         + jnp.dot(db, w1_ref[2 * feat:3 * feat, :], preferred_element_type=jnp.float32)
         + jnp.dot(pb, w1_ref[3 * feat:4 * feat, :], preferred_element_type=jnp.float32)
         + b1_ref[...])
    h = jnp.maximum(h, 0.0)   # ReLU; Dropout(0.2) is identity in eval mode
    out_ref[...] = (jnp.dot(h.astype(jnp.bfloat16), w2_ref[...],
                            preferred_element_type=jnp.float32) + b2_ref[...])


def classify(params, u, v):
    B = u.shape[0]
    Bp = _round_up(B, 8)                       # avoid sublane underfill
    if Bp > B:
        u = jnp.pad(u, ((0, Bp - B), (0, 0)))
        v = jnp.pad(v, ((0, Bp - B), (0, 0)))
    btile = _pick_tile(Bp, cap=256)
    kern = functools.partial(_classifier_kernel, feat=2 * LSTM_DIM)
    out = pl.pallas_call(
        kern,
        out_shape=jax.ShapeDtypeStruct((Bp, CLS_PAD), jnp.float32),
        grid_spec=pltpu.PrefetchScalarGridSpec(
            num_scalar_prefetch=0,
            grid=(Bp // btile,),
            in_specs=[
                pl.BlockSpec((btile, 2 * LSTM_DIM), lambda i: (i, 0)),
                pl.BlockSpec((btile, 2 * LSTM_DIM), lambda i: (i, 0)),
                pl.BlockSpec((8 * LSTM_DIM, MLP_HIDDEN_LAYER), lambda i: (0, 0)),
                pl.BlockSpec((1, MLP_HIDDEN_LAYER), lambda i: (0, 0)),
                pl.BlockSpec((MLP_HIDDEN_LAYER, CLS_PAD), lambda i: (0, 0)),
                pl.BlockSpec((1, CLS_PAD), lambda i: (0, 0)),
            ],
            out_specs=pl.BlockSpec((btile, CLS_PAD), lambda i: (i, 0)),
        ),
        compiler_params=pltpu.CompilerParams(
            dimension_semantics=("parallel",),
            vmem_limit_bytes=VMEM_LIMIT),
    )(u, v, params["mlp_w1"], params["mlp_b1"], params["mlp_w2"], params["mlp_b2"])
    return out[:B, :TAGSET_SIZE]


# ----------------------------------------------------------------------------
# Full SNLI forward (premise + hypothesis batched together)
# ----------------------------------------------------------------------------
def snli_forward(params, premise, hypothesis):
    prem_tokens, prem_len = premise
    hyp_tokens, hyp_len = hypothesis
    B = prem_tokens.shape[0]
    T = max(prem_tokens.shape[1], hyp_tokens.shape[1])

    def pad_t(tok):
        pad = T - tok.shape[1]
        return jnp.pad(tok, ((0, 0), (0, pad))) if pad else tok

    tokens = jnp.concatenate([pad_t(prem_tokens), pad_t(hyp_tokens)], axis=0)  # (2B, T)
    lengths = jnp.concatenate([prem_len, hyp_len], axis=0).astype(jnp.int32)   # (2B,)

    # Pad the combined batch so the recurrence matmul M-dim is >= 8 sublanes.
    # Production batches should be sized so 2B is a multiple of 256 (v6e/v7x)
    # / 128 (v5e) to fully fill the MXU.
    B2 = 2 * B
    B2p = _round_up(B2, 8)
    if B2p > B2:
        tokens = jnp.pad(tokens, ((0, B2p - B2), (0, 0)))
        lengths = jnp.pad(lengths, (0, B2p - B2))          # padded rows: length 0

    xproj = embed_project(params, tokens)            # (T, B2p, 256) bf16
    enc = bilstm_maxpool(params, xproj, lengths)     # (B2p, 2H)  [fwd | bwd] pooled
    u, v = enc[:B], enc[B:2 * B]
    return classify(params, u, v)                    # (B, TAGSET_SIZE)


# ----------------------------------------------------------------------------
# Deterministic parameter init (synthetic weights, no checkpoint loading)
# ----------------------------------------------------------------------------
def init_params(key, vocab_size):
    ks = jax.random.split(key, 16)
    scale = 0.05

    def normal(k, shape):
        return jax.random.normal(k, shape, dtype=jnp.float32) * scale

    # three embedding sources + per-source linear projections (as in the module)
    emb = [normal(ks[i], (vocab_size, EMBEDDING_DIM)) for i in range(3)]
    proj_w = [normal(ks[3 + i], (EMBEDDING_DIM, EMBEDDING_PROJECTION)) for i in range(3)]
    proj_b = [jnp.zeros((EMBEDDING_PROJECTION,), jnp.float32) for _ in range(3)]

    # fold "unweighted DME = mean of projections" into one matmul; zero-pad
    # K from 900 to 1024 so MXU loads are full-tile aligned.
    k_raw = 3 * EMBEDDING_DIM
    emb_cat = jnp.concatenate(emb, axis=1)                                       # (V, 900)
    emb_cat = jnp.pad(emb_cat, ((0, 0), (0, DME_K_PAD - k_raw))).astype(jnp.bfloat16)
    w_dme = jnp.concatenate(proj_w, axis=0) / 3.0                                # (900, 256)
    w_dme = jnp.pad(w_dme, ((0, DME_K_PAD - k_raw), (0, 0))).astype(jnp.bfloat16)
    b_dme = ((proj_b[0] + proj_b[1] + proj_b[2]) / 3.0).reshape(1, -1)           # (1, 256)

    # BiLSTM (PyTorch gate order i, f, g, o); weights stored (in, out)
    wih = [normal(ks[6], (EMBEDDING_PROJECTION, 4 * LSTM_DIM)),
           normal(ks[8], (EMBEDDING_PROJECTION, 4 * LSTM_DIM))]
    whh = [normal(ks[7], (LSTM_DIM, 4 * LSTM_DIM)),
           normal(ks[9], (LSTM_DIM, 4 * LSTM_DIM))]
    b_lstm = [jnp.zeros((1, 4 * LSTM_DIM), jnp.float32) for _ in range(2)]       # b_ih + b_hh

    w2_raw = normal(ks[11], (MLP_HIDDEN_LAYER, TAGSET_SIZE))
    w2_pad = jnp.zeros((MLP_HIDDEN_LAYER, CLS_PAD), jnp.float32).at[:, :TAGSET_SIZE].set(w2_raw)

    return {
        "emb_cat": emb_cat,
        "w_dme": w_dme,
        "b_dme": b_dme,
        "w_ih": jnp.stack(wih).astype(jnp.bfloat16),     # (2, 256, 4H)
        "w_hh": jnp.stack(whh).astype(jnp.bfloat16),     # (2, H, 4H)
        "b_ih": jnp.stack(b_lstm),                       # (2, 1, 4H) f32
        "mlp_w1": normal(ks[10], (2 * 4 * LSTM_DIM, MLP_HIDDEN_LAYER)).astype(jnp.bfloat16),
        "mlp_b1": jnp.zeros((1, MLP_HIDDEN_LAYER), jnp.float32),
        "mlp_w2": w2_pad.astype(jnp.bfloat16),           # (1024, 128) lane-dense
        "mlp_b2": jnp.zeros((1, CLS_PAD), jnp.float32),
    }


if __name__ == "__main__":
    VOCAB = 50
    B, T = 2, 8

    key = jax.random.PRNGKey(0)
    k_param, k_prem, k_hyp = jax.random.split(key, 3)

    params = init_params(k_param, VOCAB)
    prem_tokens = jax.random.randint(k_prem, (B, T), 0, VOCAB, dtype=jnp.int32)
    hyp_tokens = jax.random.randint(k_hyp, (B, T), 0, VOCAB, dtype=jnp.int32)
    prem_len = jnp.array([T, 5], dtype=jnp.int32)
    hyp_len = jnp.array([6, T], dtype=jnp.int32)

    out = snli_forward(params, (prem_tokens, prem_len), (hyp_tokens, hyp_len))
    out = jax.block_until_ready(out)
    assert out.shape == (B, TAGSET_SIZE) and out.dtype == jnp.float32
    assert bool(jnp.all(jnp.isfinite(out)))
    print("KERNEL_OK")
</pallas_src>

<mosaic_0001>
module attributes {stable_mosaic.version = 11 : i64} {
  func.func @_embed_proj_kernel(%arg0: i32, %arg1: memref<64x1024xbf16, #tpu.memory_space<vmem>>, %arg2: memref<1024x256xbf16, #tpu.memory_space<vmem>>, %arg3: memref<1x256xf32, #tpu.memory_space<vmem>>, %arg4: memref<64x256xbf16, #tpu.memory_space<vmem>>) attributes {dimension_semantics = [#tpu.dimension_semantics<parallel>], iteration_bounds = array<i64: 1>, scalar_prefetch = 0 : i64, scratch_operands = 0 : i64, tpu.core_type = #tpu.core_type<tc>, window_params = [{transform_indices = @transform_0, window_bounds = array<i64: 64, 1024>}, {pipeline_mode = #tpu.pipeline_mode<synchronous>, transform_indices = @transform_1, window_bounds = array<i64: 1024, 256>}, {pipeline_mode = #tpu.pipeline_mode<synchronous>, transform_indices = @transform_2, window_bounds = array<i64: 1, 256>}, {transform_indices = @transform_3, window_bounds = array<i64: 64, 256>}]} {
    %c0 = arith.constant 0 : index
    %c0_0 = arith.constant 0 : index
    %0 = vector.load %arg1[%c0, %c0_0] : memref<64x1024xbf16, #tpu.memory_space<vmem>>, vector<64x1024xbf16>
    %c0_1 = arith.constant 0 : index
    %c0_2 = arith.constant 0 : index
    %1 = vector.load %arg2[%c0_1, %c0_2] : memref<1024x256xbf16, #tpu.memory_space<vmem>>, vector<1024x256xbf16>
    %cst = arith.constant dense<0.000000e+00> : vector<64x256xf32>
    %2 = tpu.matmul %0, %1, %cst {dimension_numbers = #tpu.dot_dimension_numbers<[1], [0], [0], [1], [0, 0, 1, 1], [], []>} : vector<64x1024xbf16>, vector<1024x256xbf16>, vector<64x256xf32> -> vector<64x256xf32>
    %c0_3 = arith.constant 0 : index
    %c0_4 = arith.constant 0 : index
    %3 = vector.load %arg3[%c0_3, %c0_4] : memref<1x256xf32, #tpu.memory_space<vmem>>, vector<1x256xf32>
    %4 = vector.broadcast %3 : vector<1x256xf32> to vector<64x256xf32>
    %5 = arith.addf %2, %4 : vector<64x256xf32>
    %6 = arith.truncf %5 : vector<64x256xf32> to vector<64x256xbf16>
    %c0_5 = arith.constant 0 : index
    %c0_6 = arith.constant 0 : index
    %7 = vector.load %arg4[%c0_5, %c0_6] : memref<64x256xbf16, #tpu.memory_space<vmem>>, vector<64x256xbf16>
    tpu.vector_store %arg4[%c0_5, %c0_6], %6 {strides = array<i32>} : memref<64x256xbf16, #tpu.memory_space<vmem>>, vector<64x256xbf16>,
    return
  }
  func.func @transform_0(%arg0: i32) -> (i32, i32) {
    %c0_i32 = arith.constant 0 : i32
    %c0_i32_0 = arith.constant 0 : i32
    return %arg0, %c0_i32 : i32, i32
  }
  func.func @transform_1(%arg0: i32) -> (i32, i32) {
    %c0_i32 = arith.constant 0 : i32
    %c0_i32_0 = arith.constant 0 : i32
    %c0_i32_1 = arith.constant 0 : i32
    return %c0_i32, %c0_i32_0 : i32, i32
  }
  func.func @transform_2(%arg0: i32) -> (i32, i32) {
    %c0_i32 = arith.constant 0 : i32
    %c0_i32_0 = arith.constant 0 : i32
    %c0_i32_1 = arith.constant 0 : i32
    return %c0_i32, %c0_i32_0 : i32, i32
  }
  func.func @transform_3(%arg0: i32) -> (i32, i32) {
    %c0_i32 = arith.constant 0 : i32
    %c0_i32_0 = arith.constant 0 : i32
    return %arg0, %c0_i32 : i32, i32
  }
}

</mosaic_0001>

<llo_original>
// kernel: tpu_custom_call.1
$region0: #{tpu_custom_call.1}
  #allocation0 [shape = 'u32[]', space=smem, size = 0x4, offset = 0x4, fixed_abs, tag = 'smem constant byte address 0x4 - core index']
  #allocation1 [shape = 'u32[144,128]{1,0:T(1,128)}', space=vmem, size = 0x12000, scoped, tag = 'internal scratch']
  %s0 = inlined_call_operand.hbm [shape: bf16[64,1024], index: 0, kind: input, shape index: {}]
  %s1 = inlined_call_operand.hbm [shape: bf16[1024,256], index: 1, kind: input, shape index: {}]
  %s2 = inlined_call_operand.vmem [shape: f32[1,256], index: 2, kind: input, shape index: {}]
  %s3 = inlined_call_operand.hbm [shape: bf16[64,256], index: 3, kind: output, shape index: {}]
  %s4 = sld [smem:[#allocation0]]
  $region30: #{tpu_custom_call.1} parent=0
    _
  %s6 = ssub.s32 1, %s4
  %s7 = scalar_select 0, %s6, %s4
  $region1: #{tpu_custom_call.1} parent=0
    #allocation2 [shape = 'u8[131072]{0}', space=vmem, size = 0x20000, scoped, tag = 'input window, operand 0, single buffered']
    #allocation3 [shape = 's32[1]{0}', space=sflag, size = 0x4, scoped, tag = 'scoped memory for tpu_custom_call.1']
    #allocation4 [shape = 's32[1]{0}', space=sflag, size = 0x4, scoped, tag = 'scoped memory for tpu_custom_call.1']
    #allocation5 [shape = 'u8[524288]{0}', space=vmem, size = 0x80000, scoped, tag = 'input window, operand 1, single buffered']
    #allocation6 [shape = 's32[1]{0}', space=sflag, size = 0x4, scoped, tag = 'scoped memory for tpu_custom_call.1']
    #allocation7 [shape = 'u8[32768]{0}', space=vmem, size = 0x8000, scoped, tag = 'output window, operand 0, single buffered']
    %8 = vsyncpa [#allocation3], 0
    %9 = vsyncpa [#allocation6], 0
    %10 = vsyncpa [#allocation4], 0
    // Predicated region
    $region2: #{tpu_custom_call.1} parent=1 // pred_check
      _
    $region3: #{tpu_custom_call.1} parent=1 // pred_check_branch
      %12 = sbr.rel (0) target = $region5
    $region4: #{tpu_custom_call.1} parent=1 // pred_region
      %s14 = ssub.s32 4096, 4096
      %15 = vsyncadd [#allocation3], %s14
      %s16 = sshll.u32 [#allocation2], 4
      %s17 = int_to_ptr.vmem [resolvable:$true] %s16
      %22 = dma.hbm_to_vmem [thread:$0]  %s0, 4096, %s17, [#allocation3], 512, 512, 32
    $region5: #{tpu_custom_call.1} parent=1 // pred_fallthru
      _
    // Predicated region
    $region6: #{tpu_custom_call.1} parent=1 // pred_check
      _
    $region7: #{tpu_custom_call.1} parent=1 // pred_check_branch
      %24 = sbr.rel (0) target = $region9
    $region8: #{tpu_custom_call.1} parent=1 // pred_region
      %s26 = ssub.s32 16384, 16384
      %27 = vsyncadd [#allocation6], %s26
      %s28 = sshll.u32 [#allocation5], 4
      %s29 = int_to_ptr.vmem [resolvable:$true] %s28
      %34 = dma.hbm_to_vmem [thread:$0]  %s1, 16384, %s29, [#allocation6], 128, 128, 8
    $region9: #{tpu_custom_call.1} parent=1 // pred_fallthru
      _
    // Predicated region
    $region10: #{tpu_custom_call.1} parent=1 // pred_check
      _
    $region11: #{tpu_custom_call.1} parent=1 // pred_check_branch
      %36 = sbr.rel (0) target = $region13
    $region12: #{tpu_custom_call.1} parent=1 // pred_region
      _
    $region13: #{tpu_custom_call.1} parent=1 // pred_fallthru
      _
    // Predicated region
    $region14: #{tpu_custom_call.1} parent=1 // pred_check
      _
    $region15: #{tpu_custom_call.1} parent=1 // pred_check_branch
      %38 = sbr.rel (0) target = $region17
    $region16: #{tpu_custom_call.1} parent=1 // pred_region
      %39 = dma.done [#allocation3], 4096
    $region17: #{tpu_custom_call.1} parent=1 // pred_fallthru
      _
    // Predicated region
    $region18: #{tpu_custom_call.1} parent=1 // pred_check
      _
    $region19: #{tpu_custom_call.1} parent=1 // pred_check_branch
      %41 = sbr.rel (0) target = $region21
    $region20: #{tpu_custom_call.1} parent=1 // pred_region
      %42 = dma.done [#allocation6], 16384
    $region21: #{tpu_custom_call.1} parent=1 // pred_fallthru
      _
    %v43 = vld [vmem:[#allocation2] sm:$0xff]
    %v44 = vld [vmem:[#allocation2 + $0x8] sm:$0xff]
    %v45 = vld [vmem:[#allocation2 + $0x10] sm:$0xff]
    %v46 = vld [vmem:[#allocation2 + $0x18] sm:$0xff]
    %v47 = vld [vmem:[#allocation2 + $0x20] sm:$0xff]
    %v48 = vld [vmem:[#allocation2 + $0x28] sm:$0xff]
    %v49 = vld [vmem:[#allocation2 + $0x30] sm:$0xff]
    %v50 = vld [vmem:[#allocation2 + $0x38] sm:$0xff]
    %v51 = vld [vmem:[#allocation2 + $0x40] sm:$0xff]
    %v52 = vld [vmem:[#allocation2 + $0x48] sm:$0xff]
    %v53 = vld [vmem:[#allocation2 + $0x50] sm:$0xff]
    %v54 = vld [vmem:[#allocation2 + $0x58] sm:$0xff]
    %v55 = vld [vmem:[#allocation2 + $0x60] sm:$0xff]
    %v56 = vld [vmem:[#allocation2 + $0x68] sm:$0xff]
    %v57 = vld [vmem:[#allocation2 + $0x70] sm:$0xff]
    %v58 = vld [vmem:[#allocation2 + $0x78] sm:$0xff]
    %v59 = vld [vmem:[#allocation2 + $0x80] sm:$0xff]
    %v60 = vld [vmem:[#allocation2 + $0x88] sm:$0xff]
    %v61 = vld [vmem:[#allocation2 + $0x90] sm:$0xff]
    %v62 = vld [vmem:[#allocation2 + $0x98] sm:$0xff]
    %v63 = vld [vmem:[#allocation2 + $0xa0] sm:$0xff]
    %v64 = vld [vmem:[#allocation2 + $0xa8] sm:$0xff]
    %v65 = vld [vmem:[#allocation2 + $0xb0] sm:$0xff]
    %v66 = vld [vmem:[#allocation2 + $0xb8] sm:$0xff]
    %v67 = vld [vmem:[#allocation2 + $0xc0] sm:$0xff]
    %v68 = vld [vmem:[#allocation2 + $0xc8] sm:$0xff]
    %v69 = vld [vmem:[#allocation2 + $0xd0] sm:$0xff]
    %v70 = vld [vmem:[#allocation2 + $0xd8] sm:$0xff]
    %v71 = vld [vmem:[#allocation2 + $0xe0] sm:$0xff]
    %v72 = vld [vmem:[#allocation2 + $0xe8] sm:$0xff]
    %v73 = vld [vmem:[#allocation2 + $0xf0] sm:$0xff]
    %v74 = vld [vmem:[#allocation2 + $0xf8] sm:$0xff]
    %v75 = vld [vmem:[#allocation5] sm:$0xff]
    %v76 = vld [vmem:[#allocation5 + $0x8] sm:$0xff]
    %v77 = vld [vmem:[#allocation5 + $0x10] sm:$0xff]
    %v78 = vld [vmem:[#allocation5 + $0x18] sm:$0xff]
    %v79 = vld [vmem:[#allocation5 + $0x20] sm:$0xff]
    %v80 = vld [vmem:[#allocation5 + $0x28] sm:$0xff]
    %v81 = vld [vmem:[#allocation5 + $0x30] sm:$0xff]
    %v82 = vld [vmem:[#allocation5 + $0x38] sm:$0xff]
    %v83 = vld [vmem:[#allocation5 + $0x40] sm:$0xff]
    %v84 = vld [vmem:[#allocation5 + $0x48] sm:$0xff]
    %v85 = vld [vmem:[#allocation5 + $0x50] sm:$0xff]
    %v86 = vld [vmem:[#allocation5 + $0x58] sm:$0xff]
    %v87 = vld [vmem:[#allocation5 + $0x60] sm:$0xff]
    %v88 = vld [vmem:[#allocation5 + $0x68] sm:$0xff]
    %v89 = vld [vmem:[#allocation5 + $0x70] sm:$0xff]
    %v90 = vld [vmem:[#allocation5 + $0x78] sm:$0xff]
    %v91 = vld [vmem:[#allocation5 + $0x80] sm:$0xff]
    %v92 = vld [vmem:[#allocation5 + $0x88] sm:$0xff]
    %v93 = vld [vmem:[#allocation5 + $0x90] sm:$0xff]
    %v94 = vld [vmem:[#allocation5 + $0x98] sm:$0xff]
    %v95 = vld [vmem:[#allocation5 + $0xa0] sm:$0xff]
    %v96 = vld [vmem:[#allocation5 + $0xa8] sm:$0xff]
    %v97 = vld [vmem:[#allocation5 + $0xb0] sm:$0xff]
    %v98 = vld [vmem:[#allocation5 + $0xb8] sm:$0xff]
    %v99 = vld [vmem:[#allocation5 + $0xc0] sm:$0xff]
    %v100 = vld [vmem:[#allocation5 + $0xc8] sm:$0xff]
    %v101 = vld [vmem:[#allocation5 + $0xd0] sm:$0xff]
    %v102 = vld [vmem:[#allocation5 + $0xd8] sm:$0xff]
    %v103 = vld [vmem:[#allocation5 + $0xe0] sm:$0xff]
    %v104 = vld [vmem:[#allocation5 + $0xe8] sm:$0xff]
    %v105 = vld [vmem:[#allocation5 + $0xf0] sm:$0xff]
    %v106 = vld [vmem:[#allocation5 + $0xf8] sm:$0xff]
    %v107 = vld [vmem:[#allocation5 + $0x100] sm:$0xff]
    %v108 = vld [vmem:[#allocation5 + $0x108] sm:$0xff]
    %v109 = vld [vmem:[#allocation5 + $0x110] sm:$0xff]
    %v110 = vld [vmem:[#allocation5 + $0x118] sm:$0xff]
    %v111 = vld [vmem:[#allocation5 + $0x120] sm:$0xff]
    %v112 = vld [vmem:[#allocation5 + $0x128] sm:$0xff]
    %v113 = vld [vmem:[#allocation5 + $0x130] sm:$0xff]
    %v114 = vld [vmem:[#allocation5 + $0x138] sm:$0xff]
    %v115 = vld [vmem:[#allocation5 + $0x140] sm:$0xff]
    %v116 = vld [vmem:[#allocation5 + $0x148] sm:$0xff]
    %v117 = vld [vmem:[#allocation5 + $0x150] sm:$0xff]
    %v118 = vld [vmem:[#allocation5 + $0x158] sm:$0xff]
    %v119 = vld [vmem:[#allocation5 + $0x160] sm:$0xff]
    %v120 = vld [vmem:[#allocation5 + $0x168] sm:$0xff]
    %v121 = vld [vmem:[#allocation5 + $0x170] sm:$0xff]
    %v122 = vld [vmem:[#allocation5 + $0x178] sm:$0xff]
    %v123 = vld [vmem:[#allocation5 + $0x180] sm:$0xff]
    %v124 = vld [vmem:[#allocation5 + $0x188] sm:$0xff]
    %v125 = vld [vmem:[#allocation5 + $0x190] sm:$0xff]
    %v126 = vld [vmem:[#allocation5 + $0x198] sm:$0xff]
    %v127 = vld [vmem:[#allocation5 + $0x1a0] sm:$0xff]
    %v128 = vld [vmem:[#allocation5 + $0x1a8] sm:$0xff]
    %v129 = vld [vmem:[#allocation5 + $0x1b0] sm:$0xff]
    %v130 = vld [vmem:[#allocation5 + $0x1b8] sm:$0xff]
    %v131 = vld [vmem:[#allocation5 + $0x1c0] sm:$0xff]
    %v132 = vld [vmem:[#allocation5 + $0x1c8] sm:$0xff]
    %v133 = vld [vmem:[#allocation5 + $0x1d0] sm:$0xff]
    %v134 = vld [vmem:[#allocation5 + $0x1d8] sm:$0xff]
    %v135 = vld [vmem:[#allocation5 + $0x1e0] sm:$0xff]
    %v136 = vld [vmem:[#allocation5 + $0x1e8] sm:$0xff]
    %v137 = vld [vmem:[#allocation5 + $0x1f0] sm:$0xff]
    %v138 = vld [vmem:[#allocation5 + $0x1f8] sm:$0xff]
    %v139 = vld [vmem:[#allocation5 + $0x200] sm:$0xff]
    %v140 = vld [vmem:[#allocation5 + $0x208] sm:$0xff]
    %v141 = vld [vmem:[#allocation5 + $0x210] sm:$0xff]
    %v142 = vld [vmem:[#allocation5 + $0x218] sm:$0xff]
    %v143 = vld [vmem:[#allocation5 + $0x220] sm:$0xff]
    %v144 = vld [vmem:[#allocation5 + $0x228] sm:$0xff]
    %v145 = vld [vmem:[#allocation5 + $0x230] sm:$0xff]
    %v146 = vld [vmem:[#allocation5 + $0x238] sm:$0xff]
    %v147 = vld [vmem:[#allocation5 + $0x240] sm:$0xff]
    %v148 = vld [vmem:[#allocation5 + $0x248] sm:$0xff]
    %v149 = vld [vmem:[#allocation5 + $0x250] sm:$0xff]
    %v150 = vld [vmem:[#allocation5 + $0x258] sm:$0xff]
    %v151 = vld [vmem:[#allocation5 + $0x260] sm:$0xff]
    %v152 = vld [vmem:[#allocation5 + $0x268] sm:$0xff]
    %v153 = vld [vmem:[#allocation5 + $0x270] sm:$0xff]
    %v154 = vld [vmem:[#allocation5 + $0x278] sm:$0xff]
    %v155 = vld [vmem:[#allocation5 + $0x280] sm:$0xff]
    %v156 = vld [vmem:[#allocation5 + $0x288] sm:$0xff]
    %v157 = vld [vmem:[#allocation5 + $0x290] sm:$0xff]
    %v158 = vld [vmem:[#allocation5 + $0x298] sm:$0xff]
    %v159 = vld [vmem:[#allocation5 + $0x2a0] sm:$0xff]
    %v160 = vld [vmem:[#allocation5 + $0x2a8] sm:$0xff]
    %v161 = vld [vmem:[#allocation5 + $0x2b0] sm:$0xff]
    %v162 = vld [vmem:[#allocation5 + $0x2b8] sm:$0xff]
    %v163 = vld [vmem:[#allocation5 + $0x2c0] sm:$0xff]
    %v164 = vld [vmem:[#allocation5 + $0x2c8] sm:$0xff]
    %v165 = vld [vmem:[#allocation5 + $0x2d0] sm:$0xff]
    %v166 = vld [vmem:[#allocation5 + $0x2d8] sm:$0xff]
    %v167 = vld [vmem:[#allocation5 + $0x2e0] sm:$0xff]
    %v168 = vld [vmem:[#allocation5 + $0x2e8] sm:$0xff]
    %v169 = vld [vmem:[#allocation5 + $0x2f0] sm:$0xff]
    %v170 = vld [vmem:[#allocation5 + $0x2f8] sm:$0xff]
    %v171 = vld [vmem:[#allocation5 + $0x300] sm:$0xff]
    %v172 = vld [vmem:[#allocation5 + $0x308] sm:$0xff]
    %v173 = vld [vmem:[#allocation5 + $0x310] sm:$0xff]
    %v174 = vld [vmem:[#allocation5 + $0x318] sm:$0xff]
    %v175 = vld [vmem:[#allocation5 + $0x320] sm:$0xff]
    %v176 = vld [vmem:[#allocation5 + $0x328] sm:$0xff]
    %v177 = vld [vmem:[#allocation5 + $0x330] sm:$0xff]
    %v178 = vld [vmem:[#allocation5 + $0x338] sm:$0xff]
    %v179 = vld [vmem:[#allocation5 + $0x340] sm:$0xff]
    %v180 = vld [vmem:[#allocation5 + $0x348] sm:$0xff]
    %v181 = vld [vmem:[#allocation5 + $0x350] sm:$0xff]
    %v182 = vld [vmem:[#allocation5 + $0x358] sm:$0xff]
    %v183 = vld [vmem:[#allocation5 + $0x360] sm:$0xff]
    %v184 = vld [vmem:[#allocation5 + $0x368] sm:$0xff]
    %v185 = vld [vmem:[#allocation5 + $0x370] sm:$0xff]
    %v186 = vld [vmem:[#allocation5 + $0x378] sm:$0xff]
    %v187 = vld [vmem:[#allocation5 + $0x380] sm:$0xff]
    %v188 = vld [vmem:[#allocation5 + $0x388] sm:$0xff]
    %v189 = vld [vmem:[#allocation5 + $0x390] sm:$0xff]
    %v190 = vld [vmem:[#allocation5 + $0x398] sm:$0xff]
    %v191 = vld [vmem:[#allocation5 + $0x3a0] sm:$0xff]
    %v192 = vld [vmem:[#allocation5 + $0x3a8] sm:$0xff]
    %v193 = vld [vmem:[#allocation5 + $0x3b0] sm:$0xff]
    %v194 = vld [vmem:[#allocation5 + $0x3b8] sm:$0xff]
    %v195 = vld [vmem:[#allocation5 + $0x3c0] sm:$0xff]
    %v196 = vld [vmem:[#allocation5 + $0x3c8] sm:$0xff]
    %v197 = vld [vmem:[#allocation5 + $0x3d0] sm:$0xff]
    %v198 = vld [vmem:[#allocation5 + $0x3d8] sm:$0xff]
    %v199 = vld [vmem:[#allocation5 + $0x3e0] sm:$0xff]
    %v200 = vld [vmem:[#allocation5 + $0x3e8] sm:$0xff]
    %v201 = vld [vmem:[#allocation5 + $0x3f0] sm:$0xff]
    %v202 = vld [vmem:[#allocation5 + $0x3f8] sm:$0xff]
    %v203 = vld [vmem:[%s2] sm:$0x3]
    %v205 = vlaneseq
    %v206 = vshrl.u32 %v205, 7
    %v207 = vsub.s32 0, %v206
    %v208 = vrot.slane %v203, %v207
    %v209 = vlaneseq
    %v210 = vshrl.u32 %v209, 7
    %v211 = vsub.s32 1, %v210
    %v212 = vrot.slane %v203, %v211
    %v247 = vunpack.c.l.b16 %v43
    %v248 = vunpack.c.h.b16 %v43
    %v249 = vunpack.c.l.b16 %v44
    %v250 = vunpack.c.h.b16 %v44
    %v251 = vunpack.c.l.b16 %v45
    %v252 = vunpack.c.h.b16 %v45
    %v253 = vunpack.c.l.b16 %v46
    %v254 = vunpack.c.h.b16 %v46
    %v255 = vunpack.c.l.b16 %v47
    %v256 = vunpack.c.h.b16 %v47
    %v257 = vunpack.c.l.b16 %v48
    %v258 = vunpack.c.h.b16 %v48
    %v259 = vunpack.c.l.b16 %v49
    %v260 = vunpack.c.h.b16 %v49
    %v261 = vunpack.c.l.b16 %v50
    %v262 = vunpack.c.h.b16 %v50
    %v263 = vunpack.c.l.b16 %v51
    %v264 = vunpack.c.h.b16 %v51
    %v265 = vunpack.c.l.b16 %v52
    %v266 = vunpack.c.h.b16 %v52
    %v267 = vunpack.c.l.b16 %v53
    %v268 = vunpack.c.h.b16 %v53
    %v269 = vunpack.c.l.b16 %v54
    %v270 = vunpack.c.h.b16 %v54
    %v271 = vunpack.c.l.b16 %v55
    %v272 = vunpack.c.h.b16 %v55
    %v273 = vunpack.c.l.b16 %v56
    %v274 = vunpack.c.h.b16 %v56
    %v275 = vunpack.c.l.b16 %v57
    %v276 = vunpack.c.h.b16 %v57
    %v277 = vunpack.c.l.b16 %v58
    %v278 = vunpack.c.h.b16 %v58
    %v279 = vunpack.c.l.b16 %v59
    %v280 = vunpack.c.h.b16 %v59
    %v281 = vunpack.c.l.b16 %v60
    %v282 = vunpack.c.h.b16 %v60
    %v283 = vunpack.c.l.b16 %v61
    %v284 = vunpack.c.h.b16 %v61
    %v285 = vunpack.c.l.b16 %v62
    %v286 = vunpack.c.h.b16 %v62
    %v287 = vunpack.c.l.b16 %v63
    %v288 = vunpack.c.h.b16 %v63
    %v289 = vunpack.c.l.b16 %v64
    %v290 = vunpack.c.h.b16 %v64
    %v291 = vunpack.c.l.b16 %v65
    %v292 = vunpack.c.h.b16 %v65
    %v293 = vunpack.c.l.b16 %v66
    %v294 = vunpack.c.h.b16 %v66
    %v295 = vunpack.c.l.b16 %v67
    %v296 = vunpack.c.h.b16 %v67
    %v297 = vunpack.c.l.b16 %v68
    %v298 = vunpack.c.h.b16 %v68
    %v299 = vunpack.c.l.b16 %v69
    %v300 = vunpack.c.h.b16 %v69
    %v301 = vunpack.c.l.b16 %v70
    %v302 = vunpack.c.h.b16 %v70
    %v303 = vunpack.c.l.b16 %v71
    %v304 = vunpack.c.h.b16 %v71
    %v305 = vunpack.c.l.b16 %v72
    %v306 = vunpack.c.h.b16 %v72
    %v307 = vunpack.c.l.b16 %v73
    %v308 = vunpack.c.h.b16 %v73
    %v309 = vunpack.c.l.b16 %v74
    %v310 = vunpack.c.h.b16 %v74
    %v311 = vpack.c.b16 %v255, %v247
    %v312 = vpack.c.b16 %v256, %v248
    %v313 = vpack.c.b16 %v257, %v249
    %v314 = vpack.c.b16 %v258, %v250
    %v315 = vpack.c.b16 %v259, %v251
    %v316 = vpack.c.b16 %v260, %v252
    %v317 = vpack.c.b16 %v261, %v253
    %v318 = vpack.c.b16 %v262, %v254
    %v319 = vpack.c.b16 %v271, %v263
    %v320 = vpack.c.b16 %v272, %v264
    %v321 = vpack.c.b16 %v273, %v265
    %v322 = vpack.c.b16 %v274, %v266
    %v323 = vpack.c.b16 %v275, %v267
    %v324 = vpack.c.b16 %v276, %v268
    %v325 = vpack.c.b16 %v277, %v269
    %v326 = vpack.c.b16 %v278, %v270
    %v327 = vpack.c.b16 %v287, %v279
    %v328 = vpack.c.b16 %v288, %v280
    %v329 = vpack.c.b16 %v289, %v281
    %v330 = vpack.c.b16 %v290, %v282
    %v331 = vpack.c.b16 %v291, %v283
    %v332 = vpack.c.b16 %v292, %v284
    %v333 = vpack.c.b16 %v293, %v285
    %v334 = vpack.c.b16 %v294, %v286
    %v335 = vpack.c.b16 %v303, %v295
    %v336 = vpack.c.b16 %v304, %v296
    %v337 = vpack.c.b16 %v305, %v297
    %v338 = vpack.c.b16 %v306, %v298
    %v339 = vpack.c.b16 %v307, %v299
    %v340 = vpack.c.b16 %v308, %v300
    %v341 = vpack.c.b16 %v309, %v301
    %v342 = vpack.c.b16 %v310, %v302
    %v503 = vunpack.c.l.b16 %v75
    %v504 = vunpack.c.h.b16 %v75
    %v505 = vunpack.c.l.b16 %v76
    %v506 = vunpack.c.h.b16 %v76
    %v507 = vunpack.c.l.b16 %v77
    %v508 = vunpack.c.h.b16 %v77
    %v509 = vunpack.c.l.b16 %v78
    %v510 = vunpack.c.h.b16 %v78
    %v511 = vunpack.c.l.b16 %v79
    %v512 = vunpack.c.h.b16 %v79
    %v513 = vunpack.c.l.b16 %v80
    %v514 = vunpack.c.h.b16 %v80
    %v515 = vunpack.c.l.b16 %v81
    %v516 = vunpack.c.h.b16 %v81
    %v517 = vunpack.c.l.b16 %v82
    %v518 = vunpack.c.h.b16 %v82
    %v519 = vunpack.c.l.b16 %v83
    %v520 = vunpack.c.h.b16 %v83
    %v521 = vunpack.c.l.b16 %v84
    %v522 = vunpack.c.h.b16 %v84
    %v523 = vunpack.c.l.b16 %v85
    %v524 = vunpack.c.h.b16 %v85
    %v525 = vunpack.c.l.b16 %v86
    %v526 = vunpack.c.h.b16 %v86
    %v527 = vunpack.c.l.b16 %v87
    %v528 = vunpack.c.h.b16 %v87
    %v529 = vunpack.c.l.b16 %v88
    %v530 = vunpack.c.h.b16 %v88
    %v531 = vunpack.c.l.b16 %v89
    %v532 = vunpack.c.h.b16 %v89
    %v533 = vunpack.c.l.b16 %v90
    %v534 = vunpack.c.h.b16 %v90
    %v535 = vunpack.c.l.b16 %v91
    %v536 = vunpack.c.h.b16 %v91
    %v537 = vunpack.c.l.b16 %v92
    %v538 = vunpack.c.h.b16 %v92
    %v539 = vunpack.c.l.b16 %v93
    %v540 = vunpack.c.h.b16 %v93
    %v541 = vunpack.c.l.b16 %v94
    %v542 = vunpack.c.h.b16 %v94
    %v543 = vunpack.c.l.b16 %v95
    %v544 = vunpack.c.h.b16 %v95
    %v545 = vunpack.c.l.b16 %v96
    %v546 = vunpack.c.h.b16 %v96
    %v547 = vunpack.c.l.b16 %v97
    %v548 = vunpack.c.h.b16 %v97
    %v549 = vunpack.c.l.b16 %v98
    %v550 = vunpack.c.h.b16 %v98
    %v551 = vunpack.c.l.b16 %v99
    %v552 = vunpack.c.h.b16 %v99
    %v553 = vunpack.c.l.b16 %v100
    %v554 = vunpack.c.h.b16 %v100
    %v555 = vunpack.c.l.b16 %v101
    %v556 = vunpack.c.h.b16 %v101
    %v557 = vunpack.c.l.b16 %v102
    %v558 = vunpack.c.h.b16 %v102
    %v559 = vunpack.c.l.b16 %v103
    %v560 = vunpack.c.h.b16 %v103
    %v561 = vunpack.c.l.b16 %v104
    %v562 = vunpack.c.h.b16 %v104
    %v563 = vunpack.c.l.b16 %v105
    %v564 = vunpack.c.h.b16 %v105
    %v565 = vunpack.c.l.b16 %v106
    %v566 = vunpack.c.h.b16 %v106
    %v567 = vunpack.c.l.b16 %v107
    %v568 = vunpack.c.h.b16 %v107
    %v569 = vunpack.c.l.b16 %v108
    %v570 = vunpack.c.h.b16 %v108
    %v571 = vunpack.c.l.b16 %v109
    %v572 = vunpack.c.h.b16 %v109
    %v573 = vunpack.c.l.b16 %v110
    %v574 = vunpack.c.h.b16 %v110
    %v575 = vunpack.c.l.b16 %v111
    %v576 = vunpack.c.h.b16 %v111
    %v577 = vunpack.c.l.b16 %v112
    %v578 = vunpack.c.h.b16 %v112
    %v579 = vunpack.c.l.b16 %v113
    %v580 = vunpack.c.h.b16 %v113
    %v581 = vunpack.c.l.b16 %v114
    %v582 = vunpack.c.h.b16 %v114
    %v583 = vunpack.c.l.b16 %v115
    %v584 = vunpack.c.h.b16 %v115
    %v585 = vunpack.c.l.b16 %v116
    %v586 = vunpack.c.h.b16 %v116
    %v587 = vunpack.c.l.b16 %v117
    %v588 = vunpack.c.h.b16 %v117
    %v589 = vunpack.c.l.b16 %v118
    %v590 = vunpack.c.h.b16 %v118
    %v591 = vunpack.c.l.b16 %v119
    %v592 = vunpack.c.h.b16 %v119
    %v593 = vunpack.c.l.b16 %v120
    %v594 = vunpack.c.h.b16 %v120
    %v595 = vunpack.c.l.b16 %v121
    %v596 = vunpack.c.h.b16 %v121
    %v597 = vunpack.c.l.b16 %v122
    %v598 = vunpack.c.h.b16 %v122
    %v599 = vunpack.c.l.b16 %v123
    %v600 = vunpack.c.h.b16 %v123
    %v601 = vunpack.c.l.b16 %v124
    %v602 = vunpack.c.h.b16 %v124
    %v603 = vunpack.c.l.b16 %v125
    %v604 = vunpack.c.h.b16 %v125
    %v605 = vunpack.c.l.b16 %v126
    %v606 = vunpack.c.h.b16 %v126
    %v607 = vunpack.c.l.b16 %v127
    %v608 = vunpack.c.h.b16 %v127
    %v609 = vunpack.c.l.b16 %v128
    %v610 = vunpack.c.h.b16 %v128
    %v611 = vunpack.c.l.b16 %v129
    %v612 = vunpack.c.h.b16 %v129
    %v613 = vunpack.c.l.b16 %v130
    %v614 = vunpack.c.h.b16 %v130
    %v615 = vunpack.c.l.b16 %v131
    %v616 = vunpack.c.h.b16 %v131
    %v617 = vunpack.c.l.b16 %v132
    %v618 = vunpack.c.h.b16 %v132
    %v619 = vunpack.c.l.b16 %v133
    %v620 = vunpack.c.h.b16 %v133
    %v621 = vunpack.c.l.b16 %v134
    %v622 = vunpack.c.h.b16 %v134
    %v623 = vunpack.c.l.b16 %v135
    %v624 = vunpack.c.h.b16 %v135
    %v625 = vunpack.c.l.b16 %v136
    %v626 = vunpack.c.h.b16 %v136
    %v627 = vunpack.c.l.b16 %v137
    %v628 = vunpack.c.h.b16 %v137
    %v629 = vunpack.c.l.b16 %v138
    %v630 = vunpack.c.h.b16 %v138
    %v631 = vunpack.c.l.b16 %v139
    %v632 = vunpack.c.h.b16 %v139
    %v633 = vunpack.c.l.b16 %v140
    %v634 = vunpack.c.h.b16 %v140
    %v635 = vunpack.c.l.b16 %v141
    %v636 = vunpack.c.h.b16 %v141
    %v637 = vunpack.c.l.b16 %v142
    %v638 = vunpack.c.h.b16 %v142
    %v639 = vunpack.c.l.b16 %v143
    %v640 = vunpack.c.h.b16 %v143
    %v641 = vunpack.c.l.b16 %v144
    %v642 = vunpack.c.h.b16 %v144
    %v643 = vunpack.c.l.b16 %v145
    %v644 = vunpack.c.h.b16 %v145
    %v645 = vunpack.c.l.b16 %v146
    %v646 = vunpack.c.h.b16 %v146
    %v647 = vunpack.c.l.b16 %v147
    %v648 = vunpack.c.h.b16 %v147
    %v649 = vunpack.c.l.b16 %v148
    %v650 = vunpack.c.h.b16 %v148
    %v651 = vunpack.c.l.b16 %v149
    %v652 = vunpack.c.h.b16 %v149
    %v653 = vunpack.c.l.b16 %v150
    %v654 = vunpack.c.h.b16 %v150
    %v655 = vunpack.c.l.b16 %v151
    %v656 = vunpack.c.h.b16 %v151
    %v657 = vunpack.c.l.b16 %v152
    %v658 = vunpack.c.h.b16 %v152
    %v659 = vunpack.c.l.b16 %v153
    %v660 = vunpack.c.h.b16 %v153
    %v661 = vunpack.c.l.b16 %v154
    %v662 = vunpack.c.h.b16 %v154
    %v663 = vunpack.c.l.b16 %v155
    %v664 = vunpack.c.h.b16 %v155
    %v665 = vunpack.c.l.b16 %v156
    %v666 = vunpack.c.h.b16 %v156
    %v667 = vunpack.c.l.b16 %v157
    %v668 = vunpack.c.h.b16 %v157
    %v669 = vunpack.c.l.b16 %v158
    %v670 = vunpack.c.h.b16 %v158
    %v671 = vunpack.c.l.b16 %v159
    %v672 = vunpack.c.h.b16 %v159
    %v673 = vunpack.c.l.b16 %v160
    %v674 = vunpack.c.h.b16 %v160
    %v675 = vunpack.c.l.b16 %v161
    %v676 = vunpack.c.h.b16 %v161
    %v677 = vunpack.c.l.b16 %v162
    %v678 = vunpack.c.h.b16 %v162
    %v679 = vunpack.c.l.b16 %v163
    %v680 = vunpack.c.h.b16 %v163
    %v681 = vunpack.c.l.b16 %v164
    %v682 = vunpack.c.h.b16 %v164
    %v683 = vunpack.c.l.b16 %v165
    %v684 = vunpack.c.h.b16 %v165
    %v685 = vunpack.c.l.b16 %v166
    %v686 = vunpack.c.h.b16 %v166
    %v687 = vunpack.c.l.b16 %v167
    %v688 = vunpack.c.h.b16 %v167
    %v689 = vunpack.c.l.b16 %v168
    %v690 = vunpack.c.h.b16 %v168
    %v691 = vunpack.c.l.b16 %v169
    %v692 = vunpack.c.h.b16 %v169
    %v693 = vunpack.c.l.b16 %v170
    %v694 = vunpack.c.h.b16 %v170
    %v695 = vunpack.c.l.b16 %v171
    %v696 = vunpack.c.h.b16 %v171
    %v697 = vunpack.c.l.b16 %v172
    %v698 = vunpack.c.h.b16 %v172
    %v699 = vunpack.c.l.b16 %v173
    %v700 = vunpack.c.h.b16 %v173
    %v701 = vunpack.c.l.b16 %v174
    %v702 = vunpack.c.h.b16 %v174
    %v703 = vunpack.c.l.b16 %v175
    %v704 = vunpack.c.h.b16 %v175
    %v705 = vunpack.c.l.b16 %v176
    %v706 = vunpack.c.h.b16 %v176
    %v707 = vunpack.c.l.b16 %v177
    %v708 = vunpack.c.h.b16 %v177
    %v709 = vunpack.c.l.b16 %v178
    %v710 = vunpack.c.h.b16 %v178
    %v711 = vunpack.c.l.b16 %v179
    %v712 = vunpack.c.h.b16 %v179
    %v713 = vunpack.c.l.b16 %v180
    %v714 = vunpack.c.h.b16 %v180
    %v715 = vunpack.c.l.b16 %v181
    %v716 = vunpack.c.h.b16 %v181
    %v717 = vunpack.c.l.b16 %v182
    %v718 = vunpack.c.h.b16 %v182
    %v719 = vunpack.c.l.b16 %v183
    %v720 = vunpack.c.h.b16 %v183
    %v721 = vunpack.c.l.b16 %v184
    %v722 = vunpack.c.h.b16 %v184
    %v723 = vunpack.c.l.b16 %v185
    %v724 = vunpack.c.h.b16 %v185
    %v725 = vunpack.c.l.b16 %v186
    %v726 = vunpack.c.h.b16 %v186
    %v727 = vunpack.c.l.b16 %v187
    %v728 = vunpack.c.h.b16 %v187
    %v729 = vunpack.c.l.b16 %v188
    %v730 = vunpack.c.h.b16 %v188
    %v731 = vunpack.c.l.b16 %v189
    %v732 = vunpack.c.h.b16 %v189
    %v733 = vunpack.c.l.b16 %v190
    %v734 = vunpack.c.h.b16 %v190
    %v735 = vunpack.c.l.b16 %v191
    %v736 = vunpack.c.h.b16 %v191
    %v737 = vunpack.c.l.b16 %v192
    %v738 = vunpack.c.h.b16 %v192
    %v739 = vunpack.c.l.b16 %v193
    %v740 = vunpack.c.h.b16 %v193
    %v741 = vunpack.c.l.b16 %v194
    %v742 = vunpack.c.h.b16 %v194
    %v743 = vunpack.c.l.b16 %v195
    %v744 = vunpack.c.h.b16 %v195
    %v745 = vunpack.c.l.b16 %v196
    %v746 = vunpack.c.h.b16 %v196
    %v747 = vunpack.c.l.b16 %v197
    %v748 = vunpack.c.h.b16 %v197
    %v749 = vunpack.c.l.b16 %v198
    %v750 = vunpack.c.h.b16 %v198
    %v751 = vunpack.c.l.b16 %v199
    %v752 = vunpack.c.h.b16 %v199
    %v753 = vunpack.c.l.b16 %v200
    %v754 = vunpack.c.h.b16 %v200
    %v755 = vunpack.c.l.b16 %v201
    %v756 = vunpack.c.h.b16 %v201
    %v757 = vunpack.c.l.b16 %v202
    %v758 = vunpack.c.h.b16 %v202
    %v759 = vpack.c.b16 %v505, %v503
    %v760 = vpack.c.b16 %v506, %v504
    %v761 = vpack.c.b16 %v509, %v507
    %v762 = vpack.c.b16 %v510, %v508
    %v763 = vpack.c.b16 %v513, %v511
    %v764 = vpack.c.b16 %v514, %v512
    %v765 = vpack.c.b16 %v517, %v515
    %v766 = vpack.c.b16 %v518, %v516
    %v767 = vpack.c.b16 %v521, %v519
    %v768 = vpack.c.b16 %v522, %v520
    %v769 = vpack.c.b16 %v525, %v523
    %v770 = vpack.c.b16 %v526, %v524
    %v771 = vpack.c.b16 %v529, %v527
    %v772 = vpack.c.b16 %v530, %v528
    %v773 = vpack.c.b16 %v533, %v531
    %v774 = vpack.c.b16 %v534, %v532
    %v775 = vpack.c.b16 %v537, %v535
    %v776 = vpack.c.b16 %v538, %v536
    %v777 = vpack.c.b16 %v541, %v539
    %v778 = vpack.c.b16 %v542, %v540
    %v779 = vpack.c.b16 %v545, %v543
    %v780 = vpack.c.b16 %v546, %v544
    %v781 = vpack.c.b16 %v549, %v547
    %v782 = vpack.c.b16 %v550, %v548
    %v783 = vpack.c.b16 %v553, %v551
    %v784 = vpack.c.b16 %v554, %v552
    %v785 = vpack.c.b16 %v557, %v555
    %v786 = vpack.c.b16 %v558, %v556
    %v787 = vpack.c.b16 %v561, %v559
    %v788 = vpack.c.b16 %v562, %v560
    %v789 = vpack.c.b16 %v565, %v563
    %v790 = vpack.c.b16 %v566, %v564
    %v791 = vpack.c.b16 %v569, %v567
    %v792 = vpack.c.b16 %v570, %v568
    %v793 = vpack.c.b16 %v573, %v571
    %v794 = vpack.c.b16 %v574, %v572
    %v795 = vpack.c.b16 %v577, %v575
    %v796 = vpack.c.b16 %v578, %v576
    %v797 = vpack.c.b16 %v581, %v579
    %v798 = vpack.c.b16 %v582, %v580
    %v799 = vpack.c.b16 %v585, %v583
    %v800 = vpack.c.b16 %v586, %v584
    %v801 = vpack.c.b16 %v589, %v587
    %v802 = vpack.c.b16 %v590, %v588
    %v803 = vpack.c.b16 %v593, %v591
    %v804 = vpack.c.b16 %v594, %v592
    %v805 = vpack.c.b16 %v597, %v595
    %v806 = vpack.c.b16 %v598, %v596
    %v807 = vpack.c.b16 %v601, %v599
    %v808 = vpack.c.b16 %v602, %v600
    %v809 = vpack.c.b16 %v605, %v603
    %v810 = vpack.c.b16 %v606, %v604
    %v811 = vpack.c.b16 %v609, %v607
    %v812 = vpack.c.b16 %v610, %v608
    %v813 = vpack.c.b16 %v613, %v611
    %v814 = vpack.c.b16 %v614, %v612
    %v815 = vpack.c.b16 %v617, %v615
    %v816 = vpack.c.b16 %v618, %v616
    %v817 = vpack.c.b16 %v621, %v619
    %v818 = vpack.c.b16 %v622, %v620
    %v819 = vpack.c.b16 %v625, %v623
    %v820 = vpack.c.b16 %v626, %v624
    %v821 = vpack.c.b16 %v629, %v627
    %v822 = vpack.c.b16 %v630, %v628
    %v823 = vpack.c.b16 %v633, %v631
    %v824 = vpack.c.b16 %v634, %v632
    %v825 = vpack.c.b16 %v637, %v635
    %v826 = vpack.c.b16 %v638, %v636
    %v827 = vpack.c.b16 %v641, %v639
    %v828 = vpack.c.b16 %v642, %v640
    %v829 = vpack.c.b16 %v645, %v643
    %v830 = vpack.c.b16 %v646, %v644
    %v831 = vpack.c.b16 %v649, %v647
    %v832 = vpack.c.b16 %v650, %v648
    %v833 = vpack.c.b16 %v653, %v651
    %v834 = vpack.c.b16 %v654, %v652
    %v835 = vpack.c.b16 %v657, %v655
    %v836 = vpack.c.b16 %v658, %v656
    %v837 = vpack.c.b16 %v661, %v659
    %v838 = vpack.c.b16 %v662, %v660
    %v839 = vpack.c.b16 %v665, %v663
    %v840 = vpack.c.b16 %v666, %v664
    %v841 = vpack.c.b16 %v669, %v667
    %v842 = vpack.c.b16 %v670, %v668
    %v843 = vpack.c.b16 %v673, %v671
    %v844 = vpack.c.b16 %v674, %v672
    %v845 = vpack.c.b16 %v677, %v675
    %v846 = vpack.c.b16 %v678, %v676
    %v847 = vpack.c.b16 %v681, %v679
    %v848 = vpack.c.b16 %v682, %v680
    %v849 = vpack.c.b16 %v685, %v683
    %v850 = vpack.c.b16 %v686, %v684
    %v851 = vpack.c.b16 %v689, %v687
    %v852 = vpack.c.b16 %v690, %v688
    %v853 = vpack.c.b16 %v693, %v691
    %v854 = vpack.c.b16 %v694, %v692
    %v855 = vpack.c.b16 %v697, %v695
    %v856 = vpack.c.b16 %v698, %v696
    %v857 = vpack.c.b16 %v701, %v699
    %v858 = vpack.c.b16 %v702, %v700
    %v859 = vpack.c.b16 %v705, %v703
    %v860 = vpack.c.b16 %v706, %v704
    %v861 = vpack.c.b16 %v709, %v707
    %v862 = vpack.c.b16 %v710, %v708
    %v863 = vpack.c.b16 %v713, %v711
    %v864 = vpack.c.b16 %v714, %v712
    %v865 = vpack.c.b16 %v717, %v715
    %v866 = vpack.c.b16 %v718, %v716
    %v867 = vpack.c.b16 %v721, %v719
    %v868 = vpack.c.b16 %v722, %v720
    %v869 = vpack.c.b16 %v725, %v723
    %v870 = vpack.c.b16 %v726, %v724
    %v871 = vpack.c.b16 %v729, %v727
    %v872 = vpack.c.b16 %v730, %v728
    %v873 = vpack.c.b16 %v733, %v731
    %v874 = vpack.c.b16 %v734, %v732
    %v875 = vpack.c.b16 %v737, %v735
    %v876 = vpack.c.b16 %v738, %v736
    %v877 = vpack.c.b16 %v741, %v739
    %v878 = vpack.c.b16 %v742, %v740
    %v879 = vpack.c.b16 %v745, %v743
    %v880 = vpack.c.b16 %v746, %v744
    %v881 = vpack.c.b16 %v749, %v747
    %v882 = vpack.c.b16 %v750, %v748
    %v883 = vpack.c.b16 %v753, %v751
    %v884 = vpack.c.b16 %v754, %v752
    %v885 = vpack.c.b16 %v757, %v755
    %v886 = vpack.c.b16 %v758, %v756
    %1015 = vmatprep.subr.bf16.mxu0 %v760
    %1016 = vmatpush1.bf16.msra.mxu0 %v759
    %1017 = vmatprep.subr.bf16.mxu0 %v762
    %1018 = vmatpush1.bf16.msra.mxu0 %v761
    %1019 = vmatprep.subr.bf16.mxu0 %v764
    %1020 = vmatpush1.bf16.msra.mxu0 %v763
    %1021 = vmatprep.subr.bf16.mxu0 %v766
    %1022 = vmatpush1.bf16.msra.mxu0 %v765
    %1023 = vmatprep.subr.bf16.mxu0 %v768
    %1024 = vmatpush1.bf16.msra.mxu0 %v767
    %1025 = vmatprep.subr.bf16.mxu0 %v770
    %1026 = vmatpush1.bf16.msra.mxu0 %v769
    %1027 = vmatprep.subr.bf16.mxu0 %v772
    %1028 = vmatpush1.bf16.msra.mxu0 %v771
    %1029 = vmatprep.subr.bf16.mxu0 %v774
    %1030 = vmatpush1.bf16.msra.mxu0 %v773
    %1031 = vmatprep.subr.bf16.mxu0 %v776
    %1032 = vmatpush1.bf16.msra.mxu0 %v775
    %1033 = vmatprep.subr.bf16.mxu0 %v778
    %1034 = vmatpush1.bf16.msra.mxu0 %v777
    %1035 = vmatprep.subr.bf16.mxu0 %v780
    %1036 = vmatpush1.bf16.msra.mxu0 %v779
    %1037 = vmatprep.subr.bf16.mxu0 %v782
    %1038 = vmatpush1.bf16.msra.mxu0 %v781
    %1039 = vmatprep.subr.bf16.mxu0 %v784
    %1040 = vmatpush1.bf16.msra.mxu0 %v783
    %1041 = vmatprep.subr.bf16.mxu0 %v786
    %1042 = vmatpush1.bf16.msra.mxu0 %v785
    %1043 = vmatprep.subr.bf16.mxu0 %v788
    %1044 = vmatpush1.bf16.msra.mxu0 %v787
    %1045 = vmatprep.subr.bf16.mxu0 %v790
    %1046 = vmatpush1.bf16.msra.mxu0 %v789
    %1047 = vmatprep.mubr.bf16.mxu0 %v312
    %1048 = vmatmul.mubr.bf16.gmra.mrb[0].mxu0 %v311
    %v1049 = vpop.f32.mrb[0].mxu0
    %v1050 = vadd.f32 %v208, %v1049
    %v1051 = vpop.f32.mrb[0].mxu0
    %v1052 = vadd.f32 %v212, %v1051
    %v1053 = vpop.f32.mrb[0].mxu0
    %v1054 = vadd.f32 %v208, %v1053
    %v1055 = vpop.f32.mrb[0].mxu0
    %v1056 = vadd.f32 %v212, %v1055
    %1057 = vmatprep.mubr.bf16.mxu0 %v320
    %1058 = vmatmul.mubr.bf16.gmra.mrb[0].mxu0 %v319
    %v1059 = vpop.f32.mrb[0].mxu0
    %v1060 = vadd.f32 %v208, %v1059
    %v1061 = vpop.f32.mrb[0].mxu0
    %v1062 = vadd.f32 %v212, %v1061
    %v1063 = vpop.f32.mrb[0].mxu0
    %v1064 = vadd.f32 %v208, %v1063
    %v1065 = vpop.f32.mrb[0].mxu0
    %v1066 = vadd.f32 %v212, %v1065
    %1067 = vmatprep.mubr.bf16.mxu0 %v328
    %1068 = vmatmul.mubr.bf16.gmra.mrb[0].mxu0 %v327
    %v1069 = vpop.f32.mrb[0].mxu0
    %v1070 = vadd.f32 %v208, %v1069
    %v1071 = vpop.f32.mrb[0].mxu0
    %v1072 = vadd.f32 %v212, %v1071
    %v1073 = vpop.f32.mrb[0].mxu0
    %v1074 = vadd.f32 %v208, %v1073
    %v1075 = vpop.f32.mrb[0].mxu0
    %v1076 = vadd.f32 %v212, %v1075
    %1077 = vmatprep.mubr.bf16.mxu0 %v336
    %1078 = vmatmul.mubr.bf16.gmra.mrb[0].mxu0 %v335
    %v1079 = vpop.f32.mrb[0].mxu0
    %v1080 = vadd.f32 %v208, %v1079
    %v1081 = vpop.f32.mrb[0].mxu0
    %v1082 = vadd.f32 %v212, %v1081
    %v1083 = vpop.f32.mrb[0].mxu0
    %v1084 = vadd.f32 %v208, %v1083
    %v1085 = vpop.f32.mrb[0].mxu0
    %v1086 = vadd.f32 %v212, %v1085
    %1087 = vdwg.mxu0
    %1088 = vmatprep.subr.bf16.mxu0 %v792
    %1089 = vmatpush1.bf16.msra.mxu0 %v791
    %1090 = vmatprep.subr.bf16.mxu0 %v794
    %1091 = vmatpush1.bf16.msra.mxu0 %v793
    %1092 = vmatprep.subr.bf16.mxu0 %v796
    %1093 = vmatpush1.bf16.msra.mxu0 %v795
    %1094 = vmatprep.subr.bf16.mxu0 %v798
    %1095 = vmatpush1.bf16.msra.mxu0 %v797
    %1096 = vmatprep.subr.bf16.mxu0 %v800
    %1097 = vmatpush1.bf16.msra.mxu0 %v799
    %1098 = vmatprep.subr.bf16.mxu0 %v802
    %1099 = vmatpush1.bf16.msra.mxu0 %v801
    %1100 = vmatprep.subr.bf16.mxu0 %v804
    %1101 = vmatpush1.bf16.msra.mxu0 %v803
    %1102 = vmatprep.subr.bf16.mxu0 %v806
    %1103 = vmatpush1.bf16.msra.mxu0 %v805
    %1104 = vmatprep.subr.bf16.mxu0 %v808
    %1105 = vmatpush1.bf16.msra.mxu0 %v807
    %1106 = vmatprep.subr.bf16.mxu0 %v810
    %1107 = vmatpush1.bf16.msra.mxu0 %v809
    %1108 = vmatprep.subr.bf16.mxu0 %v812
    %1109 = vmatpush1.bf16.msra.mxu0 %v811
    %1110 = vmatprep.subr.bf16.mxu0 %v814
    %1111 = vmatpush1.bf16.msra.mxu0 %v813
    %1112 = vmatprep.subr.bf16.mxu0 %v816
    %1113 = vmatpush1.bf16.msra.mxu0 %v815
    %1114 = vmatprep.subr.bf16.mxu0 %v818
    %1115 = vmatpush1.bf16.msra.mxu0 %v817
    %1116 = vmatprep.subr.bf16.mxu0 %v820
    %1117 = vmatpush1.bf16.msra.mxu0 %v819
    %1118 = vmatprep.subr.bf16.mxu0 %v822
    %1119 = vmatpush1.bf16.msra.mxu0 %v821
    %1120 = vmatprep.mubr.bf16.mxu0 %v314
    %1121 = vmatmul.mubr.bf16.gmra.mrb[0].mxu0 %v313
    %v1122 = vpop.f32.mrb[0].mxu0
    %v1123 = vadd.f32 %v1050, %v1122
    %v1124 = vpop.f32.mrb[0].mxu0
    %v1125 = vadd.f32 %v1052, %v1124
    %v1126 = vpop.f32.mrb[0].mxu0
    %v1127 = vadd.f32 %v1054, %v1126
    %v1128 = vpop.f32.mrb[0].mxu0
    %v1129 = vadd.f32 %v1056, %v1128
    %1130 = vmatprep.mubr.bf16.mxu0 %v322
    %1131 = vmatmul.mubr.bf16.gmra.mrb[0].mxu0 %v321
    %v1132 = vpop.f32.mrb[0].mxu0
    %v1133 = vadd.f32 %v1060, %v1132
    %v1134 = vpop.f32.mrb[0].mxu0
    %v1135 = vadd.f32 %v1062, %v1134
    %v1136 = vpop.f32.mrb[0].mxu0
    %v1137 = vadd.f32 %v1064, %v1136
    %v1138 = vpop.f32.mrb[0].mxu0
    %v1139 = vadd.f32 %v1066, %v1138
    %1140 = vmatprep.mubr.bf16.mxu0 %v330
    %1141 = vmatmul.mubr.bf16.gmra.mrb[0].mxu0 %v329
    %v1142 = vpop.f32.mrb[0].mxu0
    %v1143 = vadd.f32 %v1070, %v1142
    %v1144 = vpop.f32.mrb[0].mxu0
    %v1145 = vadd.f32 %v1072, %v1144
    %v1146 = vpop.f32.mrb[0].mxu0
    %v1147 = vadd.f32 %v1074, %v1146
    %v1148 = vpop.f32.mrb[0].mxu0
    %v1149 = vadd.f32 %v1076, %v1148
    %1150 = vmatprep.mubr.bf16.mxu0 %v338
    %1151 = vmatmul.mubr.bf16.gmra.mrb[0].mxu0 %v337
    %v1152 = vpop.f32.mrb[0].mxu0
    %v1153 = vadd.f32 %v1080, %v1152
    %v1154 = vpop.f32.mrb[0].mxu0
    %v1155 = vadd.f32 %v1082, %v1154
    %v1156 = vpop.f32.mrb[0].mxu0
    %v1157 = vadd.f32 %v1084, %v1156
    %v1158 = vpop.f32.mrb[0].mxu0
    %v1159 = vadd.f32 %v1086, %v1158
    %1160 = vdwg.mxu0
    %1161 = vmatprep.subr.bf16.mxu0 %v824
    %1162 = vmatpush1.bf16.msra.mxu0 %v823
    %1163 = vmatprep.subr.bf16.mxu0 %v826
    %1164 = vmatpush1.bf16.msra.mxu0 %v825
    %1165 = vmatprep.subr.bf16.mxu0 %v828
    %1166 = vmatpush1.bf16.msra.mxu0 %v827
    %1167 = vmatprep.subr.bf16.mxu0 %v830
    %1168 = vmatpush1.bf16.msra.mxu0 %v829
    %1169 = vmatprep.subr.bf16.mxu0 %v832
    %1170 = vmatpush1.bf16.msra.mxu0 %v831
    %1171 = vmatprep.subr.bf16.mxu0 %v834
    %1172 = vmatpush1.bf16.msra.mxu0 %v833
    %1173 = vmatprep.subr.bf16.mxu0 %v836
    %1174 = vmatpush1.bf16.msra.mxu0 %v835
    %1175 = vmatprep.subr.bf16.mxu0 %v838
    %1176 = vmatpush1.bf16.msra.mxu0 %v837
    %1177 = vmatprep.subr.bf16.mxu0 %v840
    %1178 = vmatpush1.bf16.msra.mxu0 %v839
    %1179 = vmatprep.subr.bf16.mxu0 %v842
    %1180 = vmatpush1.bf16.msra.mxu0 %v841
    %1181 = vmatprep.subr.bf16.mxu0 %v844
    %1182 = vmatpush1.bf16.msra.mxu0 %v843
    %1183 = vmatprep.subr.bf16.mxu0 %v846
    %1184 = vmatpush1.bf16.msra.mxu0 %v845
    %1185 = vmatprep.subr.bf16.mxu0 %v848
    %1186 = vmatpush1.bf16.msra.mxu0 %v847
    %1187 = vmatprep.subr.bf16.mxu0 %v850
    %1188 = vmatpush1.bf16.msra.mxu0 %v849
    %1189 = vmatprep.subr.bf16.mxu0 %v852
    %1190 = vmatpush1.bf16.msra.mxu0 %v851
    %1191 = vmatprep.subr.bf16.mxu0 %v854
    %1192 = vmatpush1.bf16.msra.mxu0 %v853
    %1193 = vmatprep.mubr.bf16.mxu0 %v316
    %1194 = vmatmul.mubr.bf16.gmra.mrb[0].mxu0 %v315
    %v1195 = vpop.f32.mrb[0].mxu0
    %v1196 = vadd.f32 %v1123, %v1195
    %v1197 = vpop.f32.mrb[0].mxu0
    %v1198 = vadd.f32 %v1125, %v1197
    %v1199 = vpop.f32.mrb[0].mxu0
    %v1200 = vadd.f32 %v1127, %v1199
    %v1201 = vpop.f32.mrb[0].mxu0
    %v1202 = vadd.f32 %v1129, %v1201
    %1203 = vmatprep.mubr.bf16.mxu0 %v324
    %1204 = vmatmul.mubr.bf16.gmra.mrb[0].mxu0 %v323
    %v1205 = vpop.f32.mrb[0].mxu0
    %v1206 = vadd.f32 %v1133, %v1205
    %v1207 = vpop.f32.mrb[0].mxu0
    %v1208 = vadd.f32 %v1135, %v1207
    %v1209 = vpop.f32.mrb[0].mxu0
    %v1210 = vadd.f32 %v1137, %v1209
    %v1211 = vpop.f32.mrb[0].mxu0
    %v1212 = vadd.f32 %v1139, %v1211
    %1213 = vmatprep.mubr.bf16.mxu0 %v332
    %1214 = vmatmul.mubr.bf16.gmra.mrb[0].mxu0 %v331
    %v1215 = vpop.f32.mrb[0].mxu0
    %v1216 = vadd.f32 %v1143, %v1215
    %v1217 = vpop.f32.mrb[0].mxu0
    %v1218 = vadd.f32 %v1145, %v1217
    %v1219 = vpop.f32.mrb[0].mxu0
    %v1220 = vadd.f32 %v1147, %v1219
    %v1221 = vpop.f32.mrb[0].mxu0
    %v1222 = vadd.f32 %v1149, %v1221
    %1223 = vmatprep.mubr.bf16.mxu0 %v340
    %1224 = vmatmul.mubr.bf16.gmra.mrb[0].mxu0 %v339
    %v1225 = vpop.f32.mrb[0].mxu0
    %v1226 = vadd.f32 %v1153, %v1225
    %v1227 = vpop.f32.mrb[0].mxu0
    %v1228 = vadd.f32 %v1155, %v1227
    %v1229 = vpop.f32.mrb[0].mxu0
    %v1230 = vadd.f32 %v1157, %v1229
    %v1231 = vpop.f32.mrb[0].mxu0
    %v1232 = vadd.f32 %v1159, %v1231
    %1233 = vdwg.mxu0
    %1234 = vmatprep.subr.bf16.mxu0 %v856
    %1235 = vmatpush1.bf16.msra.mxu0 %v855
    %1236 = vmatprep.subr.bf16.mxu0 %v858
    %1237 = vmatpush1.bf16.msra.mxu0 %v857
    %1238 = vmatprep.subr.bf16.mxu0 %v860
    %1239 = vmatpush1.bf16.msra.mxu0 %v859
    %1240 = vmatprep.subr.bf16.mxu0 %v862
    %1241 = vmatpush1.bf16.msra.mxu0 %v861
    %1242 = vmatprep.subr.bf16.mxu0 %v864
    %1243 = vmatpush1.bf16.msra.mxu0 %v863
    %1244 = vmatprep.subr.bf16.mxu0 %v866
    %1245 = vmatpush1.bf16.msra.mxu0 %v865
    %1246 = vmatprep.subr.bf16.mxu0 %v868
    %1247 = vmatpush1.bf16.msra.mxu0 %v867
    %1248 = vmatprep.subr.bf16.mxu0 %v870
    %1249 = vmatpush1.bf16.msra.mxu0 %v869
    %1250 = vmatprep.subr.bf16.mxu0 %v872
    %1251 = vmatpush1.bf16.msra.mxu0 %v871
    %1252 = vmatprep.subr.bf16.mxu0 %v874
    %1253 = vmatpush1.bf16.msra.mxu0 %v873
    %1254 = vmatprep.subr.bf16.mxu0 %v876
    %1255 = vmatpush1.bf16.msra.mxu0 %v875
    %1256 = vmatprep.subr.bf16.mxu0 %v878
    %1257 = vmatpush1.bf16.msra.mxu0 %v877
    %1258 = vmatprep.subr.bf16.mxu0 %v880
    %1259 = vmatpush1.bf16.msra.mxu0 %v879
    %1260 = vmatprep.subr.bf16.mxu0 %v882
    %1261 = vmatpush1.bf16.msra.mxu0 %v881
    %1262 = vmatprep.subr.bf16.mxu0 %v884
    %1263 = vmatpush1.bf16.msra.mxu0 %v883
    %1264 = vmatprep.subr.bf16.mxu0 %v886
    %1265 = vmatpush1.bf16.msra.mxu0 %v885
    %1266 = vmatprep.mubr.bf16.mxu0 %v318
    %1267 = vmatmul.mubr.bf16.gmra.mrb[0].mxu0 %v317
    %v1268 = vpop.f32.mrb[0].mxu0
    %v1269 = vadd.f32 %v1196, %v1268
    %v1270 = vpop.f32.mrb[0].mxu0
    %v1271 = vadd.f32 %v1198, %v1270
    %v1272 = vpop.f32.mrb[0].mxu0
    %v1273 = vadd.f32 %v1200, %v1272
    %v1274 = vpop.f32.mrb[0].mxu0
    %v1275 = vadd.f32 %v1202, %v1274
    %1276 = vmatprep.mubr.bf16.mxu0 %v326
    %1277 = vmatmul.mubr.bf16.gmra.mrb[0].mxu0 %v325
    %v1278 = vpop.f32.mrb[0].mxu0
    %v1279 = vadd.f32 %v1206, %v1278
    %v1280 = vpop.f32.mrb[0].mxu0
    %v1281 = vadd.f32 %v1208, %v1280
    %v1282 = vpop.f32.mrb[0].mxu0
    %v1283 = vadd.f32 %v1210, %v1282
    %v1284 = vpop.f32.mrb[0].mxu0
    %v1285 = vadd.f32 %v1212, %v1284
    %1286 = vmatprep.mubr.bf16.mxu0 %v334
    %1287 = vmatmul.mubr.bf16.gmra.mrb[0].mxu0 %v333
    %v1288 = vpop.f32.mrb[0].mxu0
    %v1289 = vadd.f32 %v1216, %v1288
    %v1290 = vpop.f32.mrb[0].mxu0
    %v1291 = vadd.f32 %v1218, %v1290
    %v1292 = vpop.f32.mrb[0].mxu0
    %v1293 = vadd.f32 %v1220, %v1292
    %v1294 = vpop.f32.mrb[0].mxu0
    %v1295 = vadd.f32 %v1222, %v1294
    %1296 = vmatprep.mubr.bf16.mxu0 %v342
    %1297 = vmatmul.mubr.bf16.gmra.mrb[0].mxu0 %v341
    %v1298 = vpop.f32.mrb[0].mxu0
    %v1299 = vadd.f32 %v1226, %v1298
    %v1300 = vpop.f32.mrb[0].mxu0
    %v1301 = vadd.f32 %v1228, %v1300
    %v1302 = vpop.f32.mrb[0].mxu0
    %v1303 = vadd.f32 %v1230, %v1302
    %v1304 = vpop.f32.mrb[0].mxu0
    %v1305 = vadd.f32 %v1232, %v1304
    %1306 = vdwg.mxu0
    %v1307 = vpack.c.bf16 %v1273, %v1269
    %v1308 = vpack.c.bf16 %v1275, %v1271
    %v1309 = vpack.c.bf16 %v1283, %v1279
    %v1310 = vpack.c.bf16 %v1285, %v1281
    %v1311 = vpack.c.bf16 %v1293, %v1289
    %v1312 = vpack.c.bf16 %v1295, %v1291
    %v1313 = vpack.c.bf16 %v1303, %v1299
    %v1314 = vpack.c.bf16 %v1305, %v1301
    %v1323 = vunpack.c.l.b16 %v1307
    %v1324 = vunpack.c.l.b16 %v1308
    %v1325 = vunpack.c.h.b16 %v1307
    %v1326 = vunpack.c.h.b16 %v1308
    %v1327 = vunpack.c.l.b16 %v1309
    %v1328 = vunpack.c.l.b16 %v1310
    %v1329 = vunpack.c.h.b16 %v1309
    %v1330 = vunpack.c.h.b16 %v1310
    %v1331 = vunpack.c.l.b16 %v1311
    %v1332 = vunpack.c.l.b16 %v1312
    %v1333 = vunpack.c.h.b16 %v1311
    %v1334 = vunpack.c.h.b16 %v1312
    %v1335 = vunpack.c.l.b16 %v1313
    %v1336 = vunpack.c.l.b16 %v1314
    %v1337 = vunpack.c.h.b16 %v1313
    %v1338 = vunpack.c.h.b16 %v1314
    %v1339 = vpack.c.b16 %v1324, %v1323
    %v1340 = vpack.c.b16 %v1326, %v1325
    %v1341 = vpack.c.b16 %v1328, %v1327
    %v1342 = vpack.c.b16 %v1330, %v1329
    %v1343 = vpack.c.b16 %v1332, %v1331
    %v1344 = vpack.c.b16 %v1334, %v1333
    %v1345 = vpack.c.b16 %v1336, %v1335
    %v1346 = vpack.c.b16 %v1338, %v1337
    %1355 = vst [vmem:[#allocation7] sm:$0xff] %v1339
    %1356 = vst [vmem:[#allocation7 + $0x8] sm:$0xff] %v1340
    %1357 = vst [vmem:[#allocation7 + $0x10] sm:$0xff] %v1341
    %1358 = vst [vmem:[#allocation7 + $0x18] sm:$0xff] %v1342
    %1359 = vst [vmem:[#allocation7 + $0x20] sm:$0xff] %v1343
    %1360 = vst [vmem:[#allocation7 + $0x28] sm:$0xff] %v1344
    %1361 = vst [vmem:[#allocation7 + $0x30] sm:$0xff] %v1345
    %1362 = vst [vmem:[#allocation7 + $0x38] sm:$0xff] %v1346
    // Predicated region
    $region22: #{tpu_custom_call.1} parent=1 // pred_check
      _
    $region23: #{tpu_custom_call.1} parent=1 // pred_check_branch
      %1364 = sbr.rel (0) target = $region25
    $region24: #{tpu_custom_call.1} parent=1 // pred_region
      %s1366 = ssub.s32 1024, 1024
      %1367 = vsyncadd [#allocation4], %s1366
      %s1368 = sshll.u32 [#allocation7], 4
      %s1369 = int_to_ptr.vmem [resolvable:$true] %s1368
      %1374 = dma.vmem_to_hbm [thread:$0]  %s1369, 1024, %s3, [#allocation4], 128, 128, 8
    $region25: #{tpu_custom_call.1} parent=1 // pred_fallthru
      _
    // Predicated region
    $region26: #{tpu_custom_call.1} parent=1 // pred_check
      _
    $region27: #{tpu_custom_call.1} parent=1 // pred_check_branch
      %1376 = sbr.rel (0) target = $region29
    $region28: #{tpu_custom_call.1} parent=1 // pred_region
      %1377 = dma.done [#allocation4], 1024
    $region29: #{tpu_custom_call.1} parent=1 // pred_fallthru
      _
    %1378 = vsyncpa [#allocation3], 1
    %1379 = vsyncpa [#allocation6], 1
    %1380 = vsyncpa [#allocation4], 1

</llo_original>
